<compile_context>
chip_gen: v7x
topology: tpu7x:2x2x1
jax: 0.10.0
libtpu: 0.0.40
codegen_flags: <defaults>
</compile_context>

<pallas_src>
import functools

import jax
import jax.numpy as jnp
from jax.experimental import pallas as pl
from jax.experimental.pallas import tpu as pltpu

_LANES = 128
_TARGET_BLOCK_BYTES = 8 << 20    # ~8 MiB per block
_VMEM_LIMIT_BYTES = 40 << 20     # 2 bufs x (in + out) x 8 MiB = 32 MiB, + headroom


def _sublane_quantum(dtype):
    # Packed vreg tiling: (8,128) for 4-byte, (16,128) for 2-byte, (32,128) for 1-byte.
    itemsize = int(jnp.dtype(dtype).itemsize)
    return max(8, 32 // max(itemsize, 1))


def _round_up(a, b):
    return ((a + b - 1) // b) * b


def _fake_quant_kernel(x_ref, o_ref, *, scale, zero_point, quant_min, quant_max):
    # Load in the original dtype; do all math in f32 on the VPU (bf16<->f32 converts are
    # in-register and free relative to the HBM traffic that bounds this kernel).
    x = x_ref[...].astype(jnp.float32)
    x_int = jnp.clip(
        jnp.floor(x / scale + zero_point),
        jnp.float32(quant_min),
        jnp.float32(quant_max),
    )
    o_ref[...] = ((x_int - zero_point) * scale).astype(o_ref.dtype)


def _fake_quantize_jnp(x, scale, zero_point, quant_min, quant_max):
    # Plain-XLA fallback for tiny / unaligned tails (identical formula).
    xf = x.astype(jnp.float32)
    x_int = jnp.clip(jnp.floor(xf / scale + zero_point), quant_min, quant_max)
    return ((x_int - zero_point) * scale).astype(x.dtype)


def fake_quantize(x, scale=5.0 / 127, zero_point=128, quant_min=0, quant_max=255):
    """Elementwise fake-quantize of an arbitrary-shaped array via a Pallas TPU kernel."""
    orig_shape = x.shape
    n = x.size
    if n == 0:
        return x

    dtype = x.dtype
    itemsize = int(jnp.dtype(dtype).itemsize)
    quantum = _sublane_quantum(dtype)
    align = quantum * _LANES

    x_flat = jnp.reshape(x, (-1,))            # free (bitcast) for contiguous arrays
    n_main = (n // align) * align

    if n_main == 0:
        # Tiny array (< quantum*128 elements): not even one packed tile -> jnp formula.
        out = _fake_quantize_jnp(x_flat, scale, zero_point, quant_min, quant_max)
        return jnp.reshape(out, orig_shape)

    x_main = x_flat if n_main == n else jax.lax.slice(x_flat, (0,), (n_main,))
    rows = n_main // _LANES                   # always a multiple of `quantum`

    # Biggest block that keeps 2 bufs x (in + out) inside the raised VMEM limit.
    max_tile_rows = max(
        quantum,
        (_TARGET_BLOCK_BYTES // (_LANES * itemsize)) // quantum * quantum,
    )

    # Balance the 1-D "parallel" grid: force an even number of near-equal blocks so the
    # two TensorCores on v7x each see comparable work (no-op cost on 1-TC chips).
    num_blocks = pl.cdiv(rows, max_tile_rows)
    if rows >= 2 * quantum:
        num_blocks = _round_up(max(num_blocks, 2), 2)
    tile_rows = min(rows, _round_up(pl.cdiv(rows, num_blocks), quantum))
    grid = (pl.cdiv(rows, tile_rows),)

    x2d = jnp.reshape(x_main, (rows, _LANES))

    kernel = functools.partial(
        _fake_quant_kernel,
        scale=float(scale),
        zero_point=float(zero_point),
        quant_min=float(quant_min),
        quant_max=float(quant_max),
    )

    out2d = pl.pallas_call(
        kernel,
        out_shape=jax.ShapeDtypeStruct((rows, _LANES), dtype),
        grid_spec=pltpu.PrefetchScalarGridSpec(
            num_scalar_prefetch=0,
            grid=grid,
            in_specs=[pl.BlockSpec((tile_rows, _LANES), lambda i: (i, 0))],
            out_specs=pl.BlockSpec((tile_rows, _LANES), lambda i: (i, 0)),
        ),
        compiler_params=pltpu.CompilerParams(
            dimension_semantics=("parallel",),     # sharded across v7x's two TensorCores
            vmem_limit_bytes=_VMEM_LIMIT_BYTES,
        ),
    )(x2d)

    out_main = jnp.reshape(out2d, (-1,))
    if n_main == n:
        return jnp.reshape(out_main, orig_shape)

    # Unaligned tail (< quantum*128 elements): jnp formula; no full-array pad/slice passes.
    tail = jax.lax.slice(x_flat, (n_main,), (n,))
    out_tail = _fake_quantize_jnp(tail, scale, zero_point, quant_min, quant_max)
    return jnp.reshape(jnp.concatenate([out_main, out_tail]), orig_shape)


def fake_quantize_ref(x, scale=5.0 / 127, zero_point=128, quant_min=0, quant_max=255):
    # Exact spec formula in f32 (true division, floor, clamp).
    xf = x.astype(jnp.float32)
    x_int = jnp.clip(jnp.floor(xf / scale + zero_point), quant_min, quant_max)
    return (x_int - zero_point) * scale


def _check(x, scale=5.0 / 127):
    out = jax.block_until_ready(fake_quantize(x, scale=scale))
    assert out.shape == x.shape and out.dtype == x.dtype

    ref = fake_quantize_ref(x, scale=scale)
    diff = jnp.abs(out.astype(jnp.float32) - ref)
    tol = float(scale)  # one quantization step: covers a 1-ulp division difference at a
                        # floor boundary and bf16 output rounding.
    assert float(jnp.max(diff)) <= tol + 1e-6, "mismatch vs reference"
    assert float(jnp.mean((diff <= 0.51 * tol).astype(jnp.float32))) > 0.99, \
        "too many mismatches vs reference"


if __name__ == "__main__":
    key = jax.random.PRNGKey(0)
    k0, k1, k2, k3 = jax.random.split(key, 4)

    # NCHW input, matching PyTorch conv conventions (elementwise op, layout-agnostic).
    x = jax.random.normal(k0, (2, 4, 16, 16), dtype=jnp.float32) * 3.0
    _check(x)

    # bf16 input: exercises the packed (16,128) tiling / fused dtype casts.
    x_bf16 = (jax.random.normal(k1, (2, 4, 16, 16), dtype=jnp.float32) * 3.0).astype(jnp.bfloat16)
    _check(x_bf16)

    # Unaligned size with a non-empty aligned prefix: exercises kernel + jnp tail path.
    x_mixed = jax.random.normal(k2, (5, 1031), dtype=jnp.float32) * 3.0
    _check(x_mixed)

    # Tiny unaligned input: pure jnp fallback path.
    x_odd = jax.random.normal(k3, (3, 5, 7), dtype=jnp.float32) * 3.0
    _check(x_odd)

    print("KERNEL_OK")
</pallas_src>

<mosaic_0001>
module attributes {stable_mosaic.version = 11 : i64} {
  func.func @_fake_quant_kernel(%arg0: i32, %arg1: memref<8x128xf32, #tpu.memory_space<vmem>>, %arg2: memref<8x128xf32, #tpu.memory_space<vmem>>) attributes {dimension_semantics = [#tpu.dimension_semantics<parallel>], iteration_bounds = array<i64: 2>, scalar_prefetch = 0 : i64, scratch_operands = 0 : i64, tpu.core_type = #tpu.core_type<tc>, window_params = [{transform_indices = @transform_0, window_bounds = array<i64: 8, 128>}, {transform_indices = @transform_1, window_bounds = array<i64: 8, 128>}]} {
    %c0 = arith.constant 0 : index
    %c0_0 = arith.constant 0 : index
    %0 = vector.load %arg1[%c0, %c0_0] : memref<8x128xf32, #tpu.memory_space<vmem>>, vector<8x128xf32>
    %cst = arith.constant 0.0393700786 : f32
    %1 = vector.broadcast %cst : f32 to vector<8x128xf32>
    %2 = arith.divf %0, %1 : vector<8x128xf32>
    %cst_1 = arith.constant 1.280000e+02 : f32
    %3 = vector.broadcast %cst_1 : f32 to vector<8x128xf32>
    %4 = arith.addf %2, %3 : vector<8x128xf32>
    %5 = math.floor %4 : vector<8x128xf32>
    %cst_2 = arith.constant 0.000000e+00 : f32
    %cst_3 = arith.constant 2.550000e+02 : f32
    %6 = vector.broadcast %cst_2 : f32 to vector<8x128xf32>
    %7 = arith.maximumf %6, %5 : vector<8x128xf32>
    %8 = vector.broadcast %cst_3 : f32 to vector<8x128xf32>
    %9 = arith.minimumf %8, %7 : vector<8x128xf32>
    %cst_4 = arith.constant 1.280000e+02 : f32
    %10 = vector.broadcast %cst_4 : f32 to vector<8x128xf32>
    %11 = arith.subf %9, %10 : vector<8x128xf32>
    %cst_5 = arith.constant 0.0393700786 : f32
    %12 = vector.broadcast %cst_5 : f32 to vector<8x128xf32>
    %13 = arith.mulf %11, %12 : vector<8x128xf32>
    %c0_6 = arith.constant 0 : index
    %c0_7 = arith.constant 0 : index
    %14 = vector.load %arg2[%c0_6, %c0_7] : memref<8x128xf32, #tpu.memory_space<vmem>>, vector<8x128xf32>
    tpu.vector_store %arg2[%c0_6, %c0_7], %13 {strides = array<i32>} : memref<8x128xf32, #tpu.memory_space<vmem>>, vector<8x128xf32>,
    return
  }
  func.func @transform_0(%arg0: i32) -> (i32, i32) {
    %c0_i32 = arith.constant 0 : i32
    %c0_i32_0 = arith.constant 0 : i32
    return %arg0, %c0_i32 : i32, i32
  }
  func.func @transform_1(%arg0: i32) -> (i32, i32) {
    %c0_i32 = arith.constant 0 : i32
    %c0_i32_0 = arith.constant 0 : i32
    return %arg0, %c0_i32 : i32, i32
  }
}

</mosaic_0001>

<llo_original>
// kernel: tpu_custom_call.1
$region0: #{tpu_custom_call.1}
  #allocation0 [shape = 'u32[]', space=smem, size = 0x4, offset = 0x4, fixed_abs, tag = 'smem constant byte address 0x4 - core index']
  #allocation1 [shape = 'u32[144,128]{1,0:T(1,128)}', space=vmem, size = 0x12000, scoped, tag = 'internal scratch']
  %s0 = inlined_call_operand.hbm [shape: f32[16,128], index: 0, kind: input, shape index: {}]
  %s1 = inlined_call_operand.hbm [shape: f32[16,128], index: 1, kind: output, shape index: {}]
  %s2 = sld [smem:[#allocation0]]
  $region41: #{tpu_custom_call.1} parent=0
    _
  %s4 = ssub.s32 1, %s2
  %s5 = scalar_select 0, %s4, %s2
  $region1: #{tpu_custom_call.1} parent=0
    #allocation2 [shape = 'u8[8192]{0}', space=vmem, size = 0x2000, scoped, tag = 'input window, operand 0']
    #allocation3 [shape = 's32[2]{0}', space=sflag, size = 0x8, scoped, tag = 'scoped memory for tpu_custom_call.1']
    #allocation4 [shape = 's32[2]{0}', space=sflag, size = 0x8, scoped, tag = 'scoped memory for tpu_custom_call.1']
    #allocation5 [shape = 'u8[8192]{0}', space=vmem, size = 0x2000, scoped, tag = 'output window, operand 0']
    %6 = vsyncpa [#allocation3], 0
    %s7 = scalar_lea.sflag [#allocation3], 1
    %8 = vsyncpa %s7, 0
    %9 = vsyncpa [#allocation4], 0
    %s10 = scalar_lea.sflag [#allocation4], 1
    %11 = vsyncpa %s10, 0
    loop: start=0, step=1, limit=4
    $region2: #{tpu_custom_call.1} parent=1 // loop_pre_header
      _
    $region3: #{tpu_custom_call.1} parent=1 // loop_header
      %s13 = sphi 0, %s17
      %p14 = scmp.ge.s32.totalorder %s13, 4
      %s23 = sphi 0, %s25
      %s26 = sphi 0, %s23
      %s27 = sphi 0, %s26
      %s43 = sphi 0, %s27
      %s49 = sphi 0, %s51
      %s52 = sphi 0, %s49
      %s53 = sphi 0, %s52
      %s69 = sphi 0, %s53
    $region4: #{tpu_custom_call.1} parent=1 // loop_header_branch
      %16 = sbr.rel (%p14) target = $region8
    $region5: #{tpu_custom_call.1} parent=1 // loop_body
      %s18 = ssub.s32 %s13, 1
      %s19 = ssub.s32 %s13, 2
      %s20 = sadd.s32 %s13, 1
      %s21 = ssub.s32 %s13, %s20
      %p22 = scmp.eq.s32.totalorder %s21, 0
      %s24 = sadd.s32 %s23, 1
      %s25 = scalar_select %p22, %s23, %s24
      %p28 = pneg %p22
      %p29 = scmp.eq.s32.totalorder %s13, 1
      %p30 = por %p28, %p29
      %p31 = scmp.ne.s32.totalorder %s23, %s26
      %p32 = scmp.eq.s32.totalorder %s13, 0
      %p33 = por %p31, %p32
      %p34 = scmp.ne.s32.totalorder %s23, %s26
      %p35 = scmp.eq.s32.totalorder %s18, 1
      %p36 = por %p34, %p35
      %p37 = scmp.ne.s32.totalorder %s26, %s27
      %p38 = scmp.eq.s32.totalorder %s18, 0
      %p39 = por %p37, %p38
      %p40 = scmp.ne.s32.totalorder %s26, %s27
      %p41 = scmp.eq.s32.totalorder %s19, 1
      %p42 = por %p40, %p41
      %p44 = scmp.ne.s32.totalorder %s27, %s43
      %p45 = scmp.eq.s32.totalorder %s19, 0
      %p46 = por %p44, %p45
      %s47 = ssub.s32 %s13, %s20
      %p48 = scmp.eq.s32.totalorder %s47, 0
      %s50 = sadd.s32 %s49, 1
      %s51 = scalar_select %p48, %s49, %s50
      %p54 = pneg %p48
      %p55 = scmp.eq.s32.totalorder %s13, 1
      %p56 = por %p54, %p55
      %p57 = scmp.ne.s32.totalorder %s49, %s52
      %p58 = scmp.eq.s32.totalorder %s13, 0
      %p59 = por %p57, %p58
      %p60 = scmp.ne.s32.totalorder %s49, %s52
      %p61 = scmp.eq.s32.totalorder %s18, 1
      %p62 = por %p60, %p61
      %p63 = scmp.ne.s32.totalorder %s52, %s53
      %p64 = scmp.eq.s32.totalorder %s18, 0
      %p65 = por %p63, %p64
      %p66 = scmp.ne.s32.totalorder %s52, %s53
      %p67 = scmp.eq.s32.totalorder %s19, 1
      %p68 = por %p66, %p67
      %p70 = scmp.ne.s32.totalorder %s53, %s69
      %p71 = scmp.eq.s32.totalorder %s19, 0
      %p72 = por %p70, %p71
      %p73 = scmp.le.s32.totalorder 1, %s13
      %p74 = scmp.lt.s32.totalorder %s13, 3
      %p75 = pnand %p73, %p74
      %p76 = pneg %p75
      // Predicated region
      $region9: #{tpu_custom_call.1} parent=5 // pred_check
        _
      $region10: #{tpu_custom_call.1} parent=5 // pred_check_branch
        %78 = sbr.rel (%p75) target = $region12
      $region11: #{tpu_custom_call.1} parent=5 // pred_region
        %s79 = ssub.s32 %s13, 1
      $region12: #{tpu_custom_call.1} parent=5 // pred_fallthru
        _
      %p80 = scmp.lt.s32.totalorder %s13, 2
      // Predicated region
      $region13: #{tpu_custom_call.1} parent=5 // pred_check
        %p81 = pneg %p80
      $region14: #{tpu_custom_call.1} parent=5 // pred_check_branch
        %83 = sbr.rel (%p81) target = $region16
      $region15: #{tpu_custom_call.1} parent=5 // pred_region
        // Predicated region
        $region17: #{tpu_custom_call.1} parent=15 // pred_check
          %p84 = pneg %p33
        $region18: #{tpu_custom_call.1} parent=15 // pred_check_branch
          %86 = sbr.rel (%p84) target = $region20
        $region19: #{tpu_custom_call.1} parent=15 // pred_region
          %s87 = sand.u32 %s23, 1
          %s88 = scalar_lea.sflag [#allocation3], %s87
          %s89 = sand.u32 %s23, 1
          %s90 = smul.addr %s89, 8
          %s91 = scalar_lea.vmem [#allocation2], %s90
          %s93 = ssub.s32 128, 128
          %94 = vsyncadd %s88, %s93
          %s95 = smul.addr %s13, 128
          %s96 = scalar_lea.hbm %s0, %s95
          %s98 = sshll.u32 %s91, 4
          %s99 = int_to_ptr.vmem [resolvable:$true] %s98
          %101 = dma.hbm_to_vmem [thread:$0]  %s96, 128, %s99, %s88
        $region20: #{tpu_custom_call.1} parent=15 // pred_fallthru
          _
      $region16: #{tpu_custom_call.1} parent=5 // pred_fallthru
        _
      %p102 = scmp.le.s32.totalorder 1, %s13
      %p103 = scmp.lt.s32.totalorder %s13, 3
      %p104 = pnand %p102, %p103
      %p105 = pneg %p104
      // Predicated region
      $region21: #{tpu_custom_call.1} parent=5 // pred_check
        _
      $region22: #{tpu_custom_call.1} parent=5 // pred_check_branch
        %107 = sbr.rel (%p104) target = $region24
      $region23: #{tpu_custom_call.1} parent=5 // pred_region
        %s108 = ssub.s32 %s13, 1
        %s109 = sand.u32 %s26, 1
        %s110 = scalar_lea.sflag [#allocation3], %s109
        %s111 = sand.u32 %s26, 1
        %s112 = smul.addr %s111, 8
        %s113 = scalar_lea.vmem [#allocation2], %s112
        // Predicated region
        $region25: #{tpu_custom_call.1} parent=23 // pred_check
          %p114 = pneg %p39
        $region26: #{tpu_custom_call.1} parent=23 // pred_check_branch
          %116 = sbr.rel (%p114) target = $region28
        $region27: #{tpu_custom_call.1} parent=23 // pred_region
          %117 = dma.done %s110, 128
        $region28: #{tpu_custom_call.1} parent=23 // pred_fallthru
          _
        %s118 = sand.u32 %s26, 1
        %s119 = scalar_lea.sflag [#allocation3], %s118
        %s120 = sand.u32 %s26, 1
        %s121 = smul.addr %s120, 8
        %s122 = scalar_lea.vmem [#allocation2], %s121
        %p123 = pneg %p39
        %p124 = pneg %p36
        %p125 = pneg %p65
        %p126 = pneg %p62
        %s127 = sand.u32 %s52, 1
        %s128 = scalar_lea.sflag [#allocation4], %s127
        %s129 = sand.u32 %s52, 1
        %s130 = smul.addr %s129, 8
        %s131 = scalar_lea.vmem [#allocation5], %s130
        %v132 = vld [vmem:[%s113] sm:$0xff]
        %v133 = vrcp.pop 0.03937008
        %v134 = vmul.f32 %v132, %v133
        %v135 = vadd.f32 %v134, 128.0
        %v136 = vfloor.f32 %v135
        %v137 = vmax.f32 %v136, 0.0
        %v138 = vmin.f32 %v137, 255.0
        %v139 = vsub.f32 %v138, 128.0
        %v140 = vmul.f32 %v139, 0.03937008
        %141 = vst [vmem:[%s131] sm:$0xff] %v140
        %s142 = sand.u32 %s52, 1
        %s143 = scalar_lea.sflag [#allocation4], %s142
        %s144 = sand.u32 %s52, 1
        %s145 = smul.addr %s144, 8
        %s146 = scalar_lea.vmem [#allocation5], %s145
        // Predicated region
        $region29: #{tpu_custom_call.1} parent=23 // pred_check
          %p147 = pneg %p62
        $region30: #{tpu_custom_call.1} parent=23 // pred_check_branch
          %149 = sbr.rel (%p147) target = $region32
        $region31: #{tpu_custom_call.1} parent=23 // pred_region
          %s151 = ssub.s32 128, 128
          %152 = vsyncadd %s143, %s151
          %s153 = smul.addr %s18, 128
          %s154 = scalar_lea.hbm %s1, %s153
          %s156 = sshll.u32 %s146, 4
          %s157 = int_to_ptr.vmem [resolvable:$true] %s156
          %159 = dma.vmem_to_hbm [thread:$0]  %s157, 128, %s154, %s143
        $region32: #{tpu_custom_call.1} parent=23 // pred_fallthru
          _
      $region24: #{tpu_custom_call.1} parent=5 // pred_fallthru
        _
      %p160 = scmp.le.s32.totalorder 2, %s13
      // Predicated region
      $region33: #{tpu_custom_call.1} parent=5 // pred_check
        %p161 = pneg %p160
      $region34: #{tpu_custom_call.1} parent=5 // pred_check_branch
        %163 = sbr.rel (%p161) target = $region36
      $region35: #{tpu_custom_call.1} parent=5 // pred_region
        %s164 = ssub.s32 %s13, 2
        // Predicated region
        $region37: #{tpu_custom_call.1} parent=35 // pred_check
          %p165 = pneg %p68
        $region38: #{tpu_custom_call.1} parent=35 // pred_check_branch
          %167 = sbr.rel (%p165) target = $region40
        $region39: #{tpu_custom_call.1} parent=35 // pred_region
          %s168 = sand.u32 %s53, 1
          %s169 = scalar_lea.sflag [#allocation4], %s168
          %s170 = sand.u32 %s53, 1
          %s171 = smul.addr %s170, 8
          %s172 = scalar_lea.vmem [#allocation5], %s171
          %173 = dma.done %s169, 128
        $region40: #{tpu_custom_call.1} parent=35 // pred_fallthru
          _
      $region36: #{tpu_custom_call.1} parent=5 // pred_fallthru
        _
    $region6: #{tpu_custom_call.1} parent=1 // loop_footer
      %s17 = sadd.s32 1, %s13
    $region7: #{tpu_custom_call.1} parent=1 // loop_footer_branch
      %12 = sbr.rel target = $region3
    $region8: #{tpu_custom_call.1} parent=1 // loop_exit
      _
    %174 = vsyncpa [#allocation3], 1
    %s175 = scalar_lea.sflag [#allocation3], 1
    %176 = vsyncpa %s175, 1
    %177 = vsyncpa [#allocation4], 1
    %s178 = scalar_lea.sflag [#allocation4], 1
    %179 = vsyncpa %s178, 1

</llo_original>
